<compile_context>
chip_gen: v7x
topology: tpu7x:2x2x1
jax: 0.10.0
libtpu: 0.0.40
codegen_flags: <defaults>
</compile_context>

<pallas_src>
import functools

import jax
import jax.numpy as jnp
from jax import lax
from jax.experimental import pallas as pl
from jax.experimental.pallas import tpu as pltpu


def _round_up(a, b):
    return (a + b - 1) // b * b


def _default_vmem_budget():
    """VMEM budget in bytes, with headroom for Mosaic scratch and spills."""
    cap = None
    try:
        cap = int(pltpu.get_tpu_info().vmem_capacity_bytes)
    except Exception:
        cap = None
    if cap is None:
        kind = ""
        try:
            kind = jax.devices()[0].device_kind.lower()
        except Exception:
            pass
        cap = 64 * 1024 * 1024 if "7" in kind else 128 * 1024 * 1024
    # ~0.64 * physical: v7x (64 MiB) -> ~41 MiB, v5e/v6e (128 MiB) -> ~82 MiB.
    return min(96 * 1024 * 1024, int(0.64 * cap))


def _exact_topk_threshold(sim, col, k_plus_1, lane_chunk):
    """(k+1)-th largest entry per row under (value desc, index asc) ordering.

    Returns (thr_v, thr_i), each (tm, 1).  Exactly k+1 positions per row
    satisfy  (v > thr_v) | (v == thr_v & i <= thr_i).
    """
    tm, mp = sim.shape
    neg_inf = jnp.float32(-jnp.inf)

    def peel_last(vals, idxs, n_iter):
        # Each iteration removes exactly one (value, index) pair: the current
        # row max, ties broken by lowest index.  The last removed pair is the
        # (k+1)-th largest -> the keep threshold.
        def body(_, carry):
            work, _tv, _ti = carry
            cur = jnp.max(work, axis=-1, keepdims=True)
            curi = jnp.min(jnp.where(work == cur, idxs, mp),
                           axis=-1, keepdims=True)
            work = jnp.where(idxs == curi, neg_inf, work)
            return work, cur, curi

        init = (vals,
                jnp.full((tm, 1), neg_inf, jnp.float32),
                jnp.zeros((tm, 1), jnp.int32))
        _, tv, ti = lax.fori_loop(0, n_iter, body, init,
                                  unroll=min(n_iter, 8))
        return tv, ti

    n_chunks = -(-mp // lane_chunk) if lane_chunk else 1
    use_chunks = (lane_chunk is not None and lane_chunk >= 128
                  and mp >= 2 * lane_chunk and k_plus_1 <= 16
                  and n_chunks * k_plus_1 <= 1024)
    if not use_chunks:
        return peel_last(sim, col, k_plus_1)

    # Stage 1: per lane-chunk top-(k+1) candidates (values + global indices),
    # extracted while each chunk is VMEM/vreg-local.  The global top-(k+1)
    # is guaranteed to be contained in the union of per-chunk candidates.
    cand_v, cand_i = [], []
    for c0 in range(0, mp, lane_chunk):
        c1 = min(c0 + lane_chunk, mp)
        work = sim[:, c0:c1]
        colc = col[:, c0:c1]
        for _ in range(k_plus_1):
            cur = jnp.max(work, axis=-1, keepdims=True)
            curi = jnp.min(jnp.where(work == cur, colc, mp),
                           axis=-1, keepdims=True)
            cand_v.append(cur)
            cand_i.append(curi)
            work = jnp.where(colc == curi, neg_inf, work)
    cv = jnp.concatenate(cand_v, axis=-1)   # (tm, n_chunks * (k+1))
    ci = jnp.concatenate(cand_i, axis=-1)
    # Stage 2: peel only the small candidate matrix to get the exact threshold.
    return peel_last(cv, ci, k_plus_1)


def _hard_knn_kernel(x_ref, xn_ref, bias_ref, o_ref, *,
                     k_plus_1, scale, agg_mean, add_bias, lane_chunk):
    # (tm, d_pad) @ (d_pad, m_pad) on the MXU, f32 accumulation.
    sim = jnp.dot(x_ref[...], xn_ref[...], preferred_element_type=jnp.float32)
    if scale != 1.0:                         # statically skipped on the cos path
        sim = sim * jnp.float32(scale)
    if add_bias:                             # pushes padded columns to ~-1e30
        sim = sim + bias_ref[...]

    tm, mp = sim.shape
    col = lax.broadcasted_iota(jnp.int32, (tm, mp), 1)

    thr_v, thr_i = _exact_topk_threshold(sim, col, k_plus_1, lane_chunk)

    # Exactly k+1 kept per row (ties broken by lowest column index).
    keep = (sim > thr_v) | ((sim == thr_v) & (col <= thr_i))
    fill = jnp.float32(0.0) if agg_mean else jnp.float32(-jnp.inf)
    o_ref[...] = jnp.where(keep, sim, fill).astype(o_ref.dtype)


def hard_knn_mask(x, x_n, similarity="dot", *, k, agg=None,
                  use_bf16_matmul=True, out_dtype=jnp.float32,
                  tm=None, lane_chunk=512, vmem_limit_bytes=None):
    """Pallas implementation of HardKNNMask.forward."""
    N, D = x.shape
    M, Dn = x_n.shape
    assert D == Dn, "x and x_n must share the feature dimension"
    assert 0 <= k and k + 1 <= M, "k+1 must not exceed the number of neighbours"
    if agg not in (None, "mean"):
        raise NotImplementedError(f"agg={agg!r} not supported")

    x = x.astype(jnp.float32)
    x_n = x_n.astype(jnp.float32)
    if similarity == "cos":
        # torch F.normalize(p=2, dim=1, eps=1e-12)
        x = x / jnp.maximum(jnp.linalg.norm(x, axis=1, keepdims=True), 1e-12)
        x_n = x_n / jnp.maximum(jnp.linalg.norm(x_n, axis=1, keepdims=True), 1e-12)
        scale = 1.0
    elif similarity == "dot":
        scale = 1.0 / float(D)
    else:
        # TODO(synk): 'l1'/'l2' cdist similarities not implemented in-kernel.
        raise NotImplementedError(f"similarity={similarity!r} not supported")

    if vmem_limit_bytes is None:
        vmem_limit_bytes = _default_vmem_budget()

    m_pad = _round_up(M, 128)          # lane-dense output / reductions
    d_pad = _round_up(D, 128)          # dense MXU contraction dim

    in_dtype = jnp.bfloat16 if use_bf16_matmul else jnp.float32
    in_elem = 2 if use_bf16_matmul else 4
    out_elem = jnp.dtype(out_dtype).itemsize

    # --- row tile sizing -------------------------------------------------
    tm_cap = min(1024, _round_up(N, 8))
    if N > 128:
        # keep >= 2 grid steps so both v7x TensorCores get work
        tm_cap = min(tm_cap, _round_up(-(-N // 2), 8))
    tm = 256 if tm is None else int(tm)
    tm = min(_round_up(max(tm, 8), 8), tm_cap)

    budget = 0.7 * vmem_limit_bytes

    def vmem_est(t):
        return (2 * t * d_pad * in_elem          # streamed x tiles (2 buffers)
                + 2 * d_pad * m_pad * in_elem    # resident x_n.T (2 buffers)
                + 2 * t * m_pad * out_elem       # output tiles (2 buffers)
                + 4 * t * m_pad * 4)             # sim / iota / keep / out values

    while tm > 8 and vmem_est(tm) > budget:      # shrink to fit
        tm = max(8, (tm // 2) // 8 * 8)
    while tm < tm_cap and vmem_est(min(2 * tm, tm_cap)) <= budget:  # grow to fill
        tm = min(_round_up(2 * tm, 8), tm_cap)
    # TODO(synk): if vmem_est(8) still exceeds the budget (huge D*M), stream
    #             x_n over an M grid axis (two-pass threshold/apply kernel).

    n_pad = _round_up(N, tm)

    # --- input layout: pre-transposed, padded, cast ----------------------
    xc = x.astype(in_dtype)
    if n_pad != N or d_pad != D:
        xc = jnp.pad(xc, ((0, n_pad - N), (0, d_pad - D)))
    xn_t = x_n.astype(in_dtype).T                       # (D, M): M on lanes
    if d_pad != D or m_pad != M:
        xn_t = jnp.pad(xn_t, ((0, d_pad - D), (0, m_pad - M)))

    add_bias = m_pad != M
    if add_bias:
        bias = jnp.where(jnp.arange(m_pad)[None, :] < M, 0.0, -1e30)
        bias = bias.astype(jnp.float32)
    else:
        bias = jnp.zeros((1, m_pad), jnp.float32)

    kernel = functools.partial(
        _hard_knn_kernel,
        k_plus_1=k + 1,
        scale=float(scale),
        agg_mean=(agg == "mean"),
        add_bias=add_bias,
        lane_chunk=lane_chunk,
    )

    out = pl.pallas_call(
        kernel,
        out_shape=jax.ShapeDtypeStruct((n_pad, m_pad), out_dtype),
        grid_spec=pltpu.PrefetchScalarGridSpec(
            num_scalar_prefetch=0,
            grid=(n_pad // tm,),
            in_specs=[
                pl.BlockSpec((tm, d_pad), lambda i: (i, 0)),     # x row tile
                pl.BlockSpec((d_pad, m_pad), lambda i: (0, 0)),  # x_n.T resident
                pl.BlockSpec((1, m_pad), lambda i: (0, 0)),      # pad bias row
            ],
            out_specs=pl.BlockSpec((tm, m_pad), lambda i: (i, 0)),
        ),
        compiler_params=pltpu.CompilerParams(
            dimension_semantics=("parallel",),
            vmem_limit_bytes=int(vmem_limit_bytes),
        ),
    )(xc, xn_t, bias)

    return out[:N, :M]


def _reference(x, x_n, similarity, k, agg):
    """Pure-JAX reference mirroring the PyTorch module (f32, HIGHEST precision)."""
    if similarity == "dot":
        sim = jnp.dot(x, x_n.T, precision=lax.Precision.HIGHEST) / x.shape[1]
    elif similarity == "cos":
        xn1 = x / jnp.maximum(jnp.linalg.norm(x, axis=1, keepdims=True), 1e-12)
        xn2 = x_n / jnp.maximum(jnp.linalg.norm(x_n, axis=1, keepdims=True), 1e-12)
        sim = jnp.dot(xn1, xn2.T, precision=lax.Precision.HIGHEST)
    _, top_i = lax.top_k(sim, k + 1)
    if agg is None:
        mask = jnp.full_like(sim, jnp.inf)
        mask = jax.vmap(lambda m, idx: m.at[idx].set(0.0))(mask, top_i)
        return sim - mask
    mask = jnp.zeros_like(sim)
    mask = jax.vmap(lambda m, idx: m.at[idx].set(1.0))(mask, top_i)
    return sim * mask


if __name__ == "__main__":
    key = jax.random.PRNGKey(0)
    kx, kn, kx2, kn2 = jax.random.split(key, 4)

    # --- small exact tests (f32 matmul path) ------------------------------
    N, M, D, k = 16, 16, 32, 3
    x = jax.random.normal(kx, (N, D), dtype=jnp.float32)
    x_n = jax.random.normal(kn, (M, D), dtype=jnp.float32)

    out_none = hard_knn_mask(x, x_n, "dot", k=k, agg=None, use_bf16_matmul=False)
    jax.block_until_ready(out_none)
    ref_none = _reference(x, x_n, "dot", k, None)
    finite = jnp.isfinite(ref_none)
    assert bool(jnp.all(finite == jnp.isfinite(out_none)))
    assert bool(jnp.allclose(jnp.where(finite, out_none, 0.0),
                             jnp.where(finite, ref_none, 0.0), atol=1e-4))

    out_mean = hard_knn_mask(x, x_n, "cos", k=k, agg="mean", use_bf16_matmul=False)
    jax.block_until_ready(out_mean)
    ref_mean = _reference(x, x_n, "cos", k, "mean")
    assert bool(jnp.allclose(out_mean, ref_mean, atol=1e-4))

    # --- moderate test: bf16 default, D/M padding, chunked top-k, 2 grid steps
    N2, M2, D2, k2 = 160, 1200, 100, 7
    x2 = jax.random.normal(kx2, (N2, D2), dtype=jnp.float32)
    x_n2 = jax.random.normal(kn2, (M2, D2), dtype=jnp.float32)
    out2 = hard_knn_mask(x2, x_n2, "dot", k=k2, agg=None)     # bf16 matmul default
    jax.block_until_ready(out2)
    assert out2.shape == (N2, M2)
    kept = jnp.isfinite(out2)
    # exactly k+1 kept per row, even with potential ties
    assert bool(jnp.all(jnp.sum(kept, axis=1) == k2 + 1))
    sim2 = jnp.dot(x2.astype(jnp.bfloat16), x_n2.astype(jnp.bfloat16).T,
                   preferred_element_type=jnp.float32) / D2
    # kept values match the bf16 similarities ...
    assert bool(jnp.allclose(jnp.where(kept, out2, 0.0),
                             jnp.where(kept, sim2, 0.0), atol=2e-3))
    # ... and dominate all non-kept similarities (top-k property)
    kept_min = jnp.min(jnp.where(kept, sim2, jnp.inf), axis=1)
    drop_max = jnp.max(jnp.where(kept, -jnp.inf, sim2), axis=1)
    assert bool(jnp.all(kept_min >= drop_max - 1e-3))

    print("KERNEL_OK")
</pallas_src>

<mosaic_0001>
module attributes {stable_mosaic.version = 11 : i64} {
  func.func @_hard_knn_kernel(%arg0: i32, %arg1: memref<16x128xf32, #tpu.memory_space<vmem>>, %arg2: memref<128x128xf32, #tpu.memory_space<vmem>>, %arg3: memref<1x128xf32, #tpu.memory_space<vmem>>, %arg4: memref<16x128xf32, #tpu.memory_space<vmem>>) attributes {dimension_semantics = [#tpu.dimension_semantics<parallel>], iteration_bounds = array<i64: 1>, scalar_prefetch = 0 : i64, scratch_operands = 0 : i64, tpu.core_type = #tpu.core_type<tc>, window_params = [{transform_indices = @transform_0, window_bounds = array<i64: 16, 128>}, {pipeline_mode = #tpu.pipeline_mode<synchronous>, transform_indices = @transform_1, window_bounds = array<i64: 128, 128>}, {pipeline_mode = #tpu.pipeline_mode<synchronous>, transform_indices = @transform_2, window_bounds = array<i64: 1, 128>}, {transform_indices = @transform_3, window_bounds = array<i64: 16, 128>}]} {
    %c0 = arith.constant 0 : index
    %c0_0 = arith.constant 0 : index
    %0 = vector.load %arg1[%c0, %c0_0] : memref<16x128xf32, #tpu.memory_space<vmem>>, vector<16x128xf32>
    %c0_1 = arith.constant 0 : index
    %c0_2 = arith.constant 0 : index
    %1 = vector.load %arg2[%c0_1, %c0_2] : memref<128x128xf32, #tpu.memory_space<vmem>>, vector<128x128xf32>
    %cst = arith.constant dense<0.000000e+00> : vector<16x128xf32>
    %2 = tpu.matmul %0, %1, %cst {dimension_numbers = #tpu.dot_dimension_numbers<[1], [0], [0], [1], [0, 0, 1, 1], [], []>} : vector<16x128xf32>, vector<128x128xf32>, vector<16x128xf32> -> vector<16x128xf32>
    %cst_3 = arith.constant 3.125000e-02 : f32
    %3 = vector.broadcast %cst_3 : f32 to vector<16x128xf32>
    %4 = arith.mulf %2, %3 : vector<16x128xf32>
    %c0_4 = arith.constant 0 : index
    %c0_5 = arith.constant 0 : index
    %5 = vector.load %arg3[%c0_4, %c0_5] : memref<1x128xf32, #tpu.memory_space<vmem>>, vector<1x128xf32>
    %6 = vector.broadcast %5 : vector<1x128xf32> to vector<16x128xf32>
    %7 = arith.addf %4, %6 : vector<16x128xf32>
    %8 = tpu.iota {dimensions = array<i32: 1>} : vector<16x128xi32>
    %cst_6 = arith.constant 0xFF800000 : f32
    %9 = vector.broadcast %cst_6 : f32 to vector<16x1xf32>
    %c0_i32 = arith.constant 0 : i32
    %10 = vector.broadcast %c0_i32 : i32 to vector<16x1xi32>
    %cst_7 = arith.constant 0xFF800000 : f32
    %c0_i32_8 = arith.constant 0 : i32
    %cst_9 = arith.constant dense<0xFF800000> : vector<16xf32>
    %11 = vector.multi_reduction <maximumf>, %7, %cst_9 [1] : vector<16x128xf32> to vector<16xf32>
    %12 = vector.shape_cast %11 : vector<16xf32> to vector<16x1xf32>
    %13 = vector.broadcast %12 : vector<16x1xf32> to vector<16x128xf32>
    %14 = arith.cmpf oeq, %7, %13 : vector<16x128xf32>
    %c128_i32 = arith.constant 128 : i32
    %15 = vector.broadcast %c128_i32 : i32 to vector<16x128xi32>
    %16 = arith.select %14, %8, %15 : vector<16x128xi1>, vector<16x128xi32>
    %cst_10 = arith.constant dense<2147483647> : vector<16xi32>
    %17 = vector.multi_reduction <minsi>, %16, %cst_10 [1] : vector<16x128xi32> to vector<16xi32>
    %18 = vector.shape_cast %17 : vector<16xi32> to vector<16x1xi32>
    %19 = vector.broadcast %18 : vector<16x1xi32> to vector<16x128xi32>
    %20 = arith.cmpi eq, %8, %19 : vector<16x128xi32>
    %21 = vector.broadcast %cst_7 : f32 to vector<16x128xf32>
    %22 = arith.select %20, %21, %7 : vector<16x128xi1>, vector<16x128xf32>
    %c1_i32 = arith.constant 1 : i32
    %cst_11 = arith.constant dense<0xFF800000> : vector<16xf32>
    %23 = vector.multi_reduction <maximumf>, %22, %cst_11 [1] : vector<16x128xf32> to vector<16xf32>
    %24 = vector.shape_cast %23 : vector<16xf32> to vector<16x1xf32>
    %25 = vector.broadcast %24 : vector<16x1xf32> to vector<16x128xf32>
    %26 = arith.cmpf oeq, %22, %25 : vector<16x128xf32>
    %c128_i32_12 = arith.constant 128 : i32
    %27 = vector.broadcast %c128_i32_12 : i32 to vector<16x128xi32>
    %28 = arith.select %26, %8, %27 : vector<16x128xi1>, vector<16x128xi32>
    %cst_13 = arith.constant dense<2147483647> : vector<16xi32>
    %29 = vector.multi_reduction <minsi>, %28, %cst_13 [1] : vector<16x128xi32> to vector<16xi32>
    %30 = vector.shape_cast %29 : vector<16xi32> to vector<16x1xi32>
    %31 = vector.broadcast %30 : vector<16x1xi32> to vector<16x128xi32>
    %32 = arith.cmpi eq, %8, %31 : vector<16x128xi32>
    %33 = vector.broadcast %cst_7 : f32 to vector<16x128xf32>
    %34 = arith.select %32, %33, %22 : vector<16x128xi1>, vector<16x128xf32>
    %c2_i32 = arith.constant 2 : i32
    %cst_14 = arith.constant dense<0xFF800000> : vector<16xf32>
    %35 = vector.multi_reduction <maximumf>, %34, %cst_14 [1] : vector<16x128xf32> to vector<16xf32>
    %36 = vector.shape_cast %35 : vector<16xf32> to vector<16x1xf32>
    %37 = vector.broadcast %36 : vector<16x1xf32> to vector<16x128xf32>
    %38 = arith.cmpf oeq, %34, %37 : vector<16x128xf32>
    %c128_i32_15 = arith.constant 128 : i32
    %39 = vector.broadcast %c128_i32_15 : i32 to vector<16x128xi32>
    %40 = arith.select %38, %8, %39 : vector<16x128xi1>, vector<16x128xi32>
    %cst_16 = arith.constant dense<2147483647> : vector<16xi32>
    %41 = vector.multi_reduction <minsi>, %40, %cst_16 [1] : vector<16x128xi32> to vector<16xi32>
    %42 = vector.shape_cast %41 : vector<16xi32> to vector<16x1xi32>
    %43 = vector.broadcast %42 : vector<16x1xi32> to vector<16x128xi32>
    %44 = arith.cmpi eq, %8, %43 : vector<16x128xi32>
    %45 = vector.broadcast %cst_7 : f32 to vector<16x128xf32>
    %46 = arith.select %44, %45, %34 : vector<16x128xi1>, vector<16x128xf32>
    %c3_i32 = arith.constant 3 : i32
    %cst_17 = arith.constant dense<0xFF800000> : vector<16xf32>
    %47 = vector.multi_reduction <maximumf>, %46, %cst_17 [1] : vector<16x128xf32> to vector<16xf32>
    %48 = vector.shape_cast %47 : vector<16xf32> to vector<16x1xf32>
    %49 = vector.broadcast %48 : vector<16x1xf32> to vector<16x128xf32>
    %50 = arith.cmpf oeq, %46, %49 : vector<16x128xf32>
    %c128_i32_18 = arith.constant 128 : i32
    %51 = vector.broadcast %c128_i32_18 : i32 to vector<16x128xi32>
    %52 = arith.select %50, %8, %51 : vector<16x128xi1>, vector<16x128xi32>
    %cst_19 = arith.constant dense<2147483647> : vector<16xi32>
    %53 = vector.multi_reduction <minsi>, %52, %cst_19 [1] : vector<16x128xi32> to vector<16xi32>
    %54 = vector.shape_cast %53 : vector<16xi32> to vector<16x1xi32>
    %55 = vector.broadcast %54 : vector<16x1xi32> to vector<16x128xi32>
    %56 = arith.cmpi eq, %8, %55 : vector<16x128xi32>
    %57 = vector.broadcast %cst_7 : f32 to vector<16x128xf32>
    %58 = arith.select %56, %57, %46 : vector<16x128xi1>, vector<16x128xf32>
    %59 = vector.broadcast %48 : vector<16x1xf32> to vector<16x128xf32>
    %60 = arith.cmpf ogt, %7, %59 : vector<16x128xf32>
    %61 = vector.broadcast %48 : vector<16x1xf32> to vector<16x128xf32>
    %62 = arith.cmpf oeq, %7, %61 : vector<16x128xf32>
    %63 = vector.broadcast %54 : vector<16x1xi32> to vector<16x128xi32>
    %64 = arith.cmpi sle, %8, %63 : vector<16x128xi32>
    %65 = arith.andi %62, %64 : vector<16x128xi1>
    %66 = arith.ori %60, %65 : vector<16x128xi1>
    %cst_20 = arith.constant 0xFF800000 : f32
    %67 = vector.broadcast %cst_20 : f32 to vector<16x128xf32>
    %68 = arith.select %66, %7, %67 : vector<16x128xi1>, vector<16x128xf32>
    %c0_21 = arith.constant 0 : index
    %c0_22 = arith.constant 0 : index
    %69 = vector.load %arg4[%c0_21, %c0_22] : memref<16x128xf32, #tpu.memory_space<vmem>>, vector<16x128xf32>
    tpu.vector_store %arg4[%c0_21, %c0_22], %68 {strides = array<i32>} : memref<16x128xf32, #tpu.memory_space<vmem>>, vector<16x128xf32>,
    return
  }
  func.func @transform_0(%arg0: i32) -> (i32, i32) {
    %c0_i32 = arith.constant 0 : i32
    %c0_i32_0 = arith.constant 0 : i32
    return %arg0, %c0_i32 : i32, i32
  }
  func.func @transform_1(%arg0: i32) -> (i32, i32) {
    %c0_i32 = arith.constant 0 : i32
    %c0_i32_0 = arith.constant 0 : i32
    %c0_i32_1 = arith.constant 0 : i32
    return %c0_i32, %c0_i32_0 : i32, i32
  }
  func.func @transform_2(%arg0: i32) -> (i32, i32) {
    %c0_i32 = arith.constant 0 : i32
    %c0_i32_0 = arith.constant 0 : i32
    %c0_i32_1 = arith.constant 0 : i32
    return %c0_i32, %c0_i32_0 : i32, i32
  }
  func.func @transform_3(%arg0: i32) -> (i32, i32) {
    %c0_i32 = arith.constant 0 : i32
    %c0_i32_0 = arith.constant 0 : i32
    return %arg0, %c0_i32 : i32, i32
  }
}

</mosaic_0001>

<llo_original>
// kernel: tpu_custom_call.1
$region0: #{tpu_custom_call.1}
  #allocation0 [shape = 'u32[]', space=smem, size = 0x4, offset = 0x4, fixed_abs, tag = 'smem constant byte address 0x4 - core index']
  #allocation1 [shape = 'u32[144,128]{1,0:T(1,128)}', space=vmem, size = 0x12000, scoped, tag = 'internal scratch']
  %s0 = inlined_call_operand.hbm [shape: f32[16,128], index: 0, kind: input, shape index: {}]
  %s1 = inlined_call_operand.hbm [shape: f32[128,128], index: 1, kind: input, shape index: {}]
  %s2 = inlined_call_operand.hbm [shape: f32[1,128], index: 2, kind: input, shape index: {}]
  %s3 = inlined_call_operand.hbm [shape: f32[16,128], index: 3, kind: output, shape index: {}]
  %s4 = sld [smem:[#allocation0]]
  $region34: #{tpu_custom_call.1} parent=0
    _
  %s6 = ssub.s32 1, %s4
  %s7 = scalar_select 0, %s6, %s4
  $region1: #{tpu_custom_call.1} parent=0
    #allocation2 [shape = 'u8[8192]{0}', space=vmem, size = 0x2000, scoped, tag = 'input window, operand 0, single buffered']
    #allocation3 [shape = 's32[1]{0}', space=sflag, size = 0x4, scoped, tag = 'scoped memory for tpu_custom_call.1']
    #allocation4 [shape = 's32[1]{0}', space=sflag, size = 0x4, scoped, tag = 'scoped memory for tpu_custom_call.1']
    #allocation5 [shape = 'u8[65536]{0}', space=vmem, size = 0x10000, scoped, tag = 'input window, operand 1, single buffered']
    #allocation6 [shape = 's32[1]{0}', space=sflag, size = 0x4, scoped, tag = 'scoped memory for tpu_custom_call.1']
    #allocation7 [shape = 'u8[512]{0}', space=vmem, size = 0x400, scoped, tag = 'input window, operand 2, single buffered']
    #allocation8 [shape = 'u8[8192]{0}', space=vmem, size = 0x2000, scoped, tag = 'output window, operand 0, single buffered']
    %8 = vsyncpa [#allocation3], 0
    %9 = vsyncpa [#allocation6], 0
    %10 = vsyncpa [#allocation4], 0
    // Predicated region
    $region2: #{tpu_custom_call.1} parent=1 // pred_check
      _
    $region3: #{tpu_custom_call.1} parent=1 // pred_check_branch
      %12 = sbr.rel (0) target = $region5
    $region4: #{tpu_custom_call.1} parent=1 // pred_region
      %s14 = ssub.s32 256, 256
      %15 = vsyncadd [#allocation3], %s14
      %s16 = sshll.u32 [#allocation2], 4
      %s17 = int_to_ptr.vmem [resolvable:$true] %s16
      %22 = dma.hbm_to_vmem [thread:$0]  %s0, 256, %s17, [#allocation3], 128, 128, 8
    $region5: #{tpu_custom_call.1} parent=1 // pred_fallthru
      _
    // Predicated region
    $region6: #{tpu_custom_call.1} parent=1 // pred_check
      _
    $region7: #{tpu_custom_call.1} parent=1 // pred_check_branch
      %24 = sbr.rel (0) target = $region9
    $region8: #{tpu_custom_call.1} parent=1 // pred_region
      %s26 = ssub.s32 2048, 2048
      %27 = vsyncadd [#allocation6], %s26
      %s28 = sshll.u32 [#allocation5], 4
      %s29 = int_to_ptr.vmem [resolvable:$true] %s28
      %34 = dma.hbm_to_vmem [thread:$0]  %s1, 2048, %s29, [#allocation6], 128, 128, 8
    $region9: #{tpu_custom_call.1} parent=1 // pred_fallthru
      _
    // Predicated region
    $region10: #{tpu_custom_call.1} parent=1 // pred_check
      _
    $region11: #{tpu_custom_call.1} parent=1 // pred_check_branch
      %36 = sbr.rel (0) target = $region13
    $region12: #{tpu_custom_call.1} parent=1 // pred_region
      %s38 = ssub.s32 16, 16
      %39 = vsyncadd [#allocation6], %s38
      %s41 = sshll.u32 [#allocation7], 4
      %s42 = int_to_ptr.vmem [resolvable:$true] %s41
      %44 = dma.hbm_to_vmem [thread:$0]  %s2, 16, %s42, [#allocation6]
    $region13: #{tpu_custom_call.1} parent=1 // pred_fallthru
      _
    // Predicated region
    $region14: #{tpu_custom_call.1} parent=1 // pred_check
      _
    $region15: #{tpu_custom_call.1} parent=1 // pred_check_branch
      %46 = sbr.rel (0) target = $region17
    $region16: #{tpu_custom_call.1} parent=1 // pred_region
      %47 = dma.done [#allocation3], 256
    $region17: #{tpu_custom_call.1} parent=1 // pred_fallthru
      _
    // Predicated region
    $region18: #{tpu_custom_call.1} parent=1 // pred_check
      _
    $region19: #{tpu_custom_call.1} parent=1 // pred_check_branch
      %49 = sbr.rel (0) target = $region21
    $region20: #{tpu_custom_call.1} parent=1 // pred_region
      %50 = dma.done [#allocation6], 2048
    $region21: #{tpu_custom_call.1} parent=1 // pred_fallthru
      _
    // Predicated region
    $region22: #{tpu_custom_call.1} parent=1 // pred_check
      _
    $region23: #{tpu_custom_call.1} parent=1 // pred_check_branch
      %52 = sbr.rel (0) target = $region25
    $region24: #{tpu_custom_call.1} parent=1 // pred_region
      %53 = dma.done [#allocation6], 16
    $region25: #{tpu_custom_call.1} parent=1 // pred_fallthru
      _
    %v54 = vld [vmem:[#allocation2] sm:$0xff]
    %v55 = vld [vmem:[#allocation2 + $0x8] sm:$0xff]
    %v56 = vld [vmem:[#allocation5] sm:$0xff]
    %v57 = vld [vmem:[#allocation5 + $0x8] sm:$0xff]
    %v58 = vld [vmem:[#allocation5 + $0x10] sm:$0xff]
    %v59 = vld [vmem:[#allocation5 + $0x18] sm:$0xff]
    %v60 = vld [vmem:[#allocation5 + $0x20] sm:$0xff]
    %v61 = vld [vmem:[#allocation5 + $0x28] sm:$0xff]
    %v62 = vld [vmem:[#allocation5 + $0x30] sm:$0xff]
    %v63 = vld [vmem:[#allocation5 + $0x38] sm:$0xff]
    %v64 = vld [vmem:[#allocation5 + $0x40] sm:$0xff]
    %v65 = vld [vmem:[#allocation5 + $0x48] sm:$0xff]
    %v66 = vld [vmem:[#allocation5 + $0x50] sm:$0xff]
    %v67 = vld [vmem:[#allocation5 + $0x58] sm:$0xff]
    %v68 = vld [vmem:[#allocation5 + $0x60] sm:$0xff]
    %v69 = vld [vmem:[#allocation5 + $0x68] sm:$0xff]
    %v70 = vld [vmem:[#allocation5 + $0x70] sm:$0xff]
    %v71 = vld [vmem:[#allocation5 + $0x78] sm:$0xff]
    %72 = vmatprep.subr.mxu0 0.0
    %73 = vmatpush1.msra.mxu0 %v56
    %74 = vmatprep.subr.mxu0 0.0
    %75 = vmatpush1.msra.mxu0 %v57
    %76 = vmatprep.subr.mxu0 0.0
    %77 = vmatpush1.msra.mxu0 %v58
    %78 = vmatprep.subr.mxu0 0.0
    %79 = vmatpush1.msra.mxu0 %v59
    %80 = vmatprep.subr.mxu0 0.0
    %81 = vmatpush1.msra.mxu0 %v60
    %82 = vmatprep.subr.mxu0 0.0
    %83 = vmatpush1.msra.mxu0 %v61
    %84 = vmatprep.subr.mxu0 0.0
    %85 = vmatpush1.msra.mxu0 %v62
    %86 = vmatprep.subr.mxu0 0.0
    %87 = vmatpush1.msra.mxu0 %v63
    %88 = vmatprep.subr.mxu0 0.0
    %89 = vmatpush1.msra.mxu0 %v64
    %90 = vmatprep.subr.mxu0 0.0
    %91 = vmatpush1.msra.mxu0 %v65
    %92 = vmatprep.subr.mxu0 0.0
    %93 = vmatpush1.msra.mxu0 %v66
    %94 = vmatprep.subr.mxu0 0.0
    %95 = vmatpush1.msra.mxu0 %v67
    %96 = vmatprep.subr.mxu0 0.0
    %97 = vmatpush1.msra.mxu0 %v68
    %98 = vmatprep.subr.mxu0 0.0
    %99 = vmatpush1.msra.mxu0 %v69
    %100 = vmatprep.subr.mxu0 0.0
    %101 = vmatpush1.msra.mxu0 %v70
    %102 = vmatprep.subr.mxu0 0.0
    %103 = vmatpush1.msra.mxu0 %v71
    %104 = vmatprep.subr.mxu0 0.0
    %105 = vmatpush1.msra.mxu0 0.0
    %106 = vmatprep.subr.mxu0 0.0
    %107 = vmatpush1.msra.mxu0 0.0
    %108 = vmatprep.subr.mxu0 0.0
    %109 = vmatpush1.msra.mxu0 0.0
    %110 = vmatprep.subr.mxu0 0.0
    %111 = vmatpush1.msra.mxu0 0.0
    %112 = vmatprep.subr.mxu0 0.0
    %113 = vmatpush1.msra.mxu0 0.0
    %114 = vmatprep.subr.mxu0 0.0
    %115 = vmatpush1.msra.mxu0 0.0
    %116 = vmatprep.subr.mxu0 0.0
    %117 = vmatpush1.msra.mxu0 0.0
    %118 = vmatprep.subr.mxu0 0.0
    %119 = vmatpush1.msra.mxu0 0.0
    %120 = vmatprep.subr.mxu0 0.0
    %121 = vmatpush1.msra.mxu0 0.0
    %122 = vmatprep.subr.mxu0 0.0
    %123 = vmatpush1.msra.mxu0 0.0
    %124 = vmatprep.subr.mxu0 0.0
    %125 = vmatpush1.msra.mxu0 0.0
    %126 = vmatprep.subr.mxu0 0.0
    %127 = vmatpush1.msra.mxu0 0.0
    %128 = vmatprep.subr.mxu0 0.0
    %129 = vmatpush1.msra.mxu0 0.0
    %130 = vmatprep.subr.mxu0 0.0
    %131 = vmatpush1.msra.mxu0 0.0
    %132 = vmatprep.subr.mxu0 0.0
    %133 = vmatpush1.msra.mxu0 0.0
    %134 = vmatprep.subr.mxu0 0.0
    %135 = vmatpush1.msra.mxu0 0.0
    %136 = vmatprep.mubr.f32.mxu0 0.0
    %137 = vmatmul.mubr.f32.gmra.mrb[0].mxu0 %v54
    %v138 = vpop.f32.mrb[0].mxu0
    %v139 = vadd.f32 0.0, %v138
    %v140 = vpop.f32.mrb[0].mxu0
    %141 = vmatprep.mubr.f32.mxu0 0.0
    %142 = vmatmul.mubr.f32.gmra.mrb[0].mxu0 %v55
    %v143 = vpop.f32.mrb[0].mxu0
    %v144 = vadd.f32 0.0, %v143
    %v145 = vpop.f32.mrb[0].mxu0
    %146 = vdwg.mxu0
    %v147 = vmul.f32 %v139, 0.03125
    %v148 = vmul.f32 %v144, 0.03125
    %v149 = vld [vmem:[#allocation7] sm:$0x1]
    %v151 = vlaneseq
    %v152 = vshrl.u32 %v151, 7
    %v153 = vsub.s32 0, %v152
    %v154 = vrot.slane %v149, %v153
    %v156 = vadd.f32 %v147, %v154
    %v157 = vadd.f32 %v148, %v154
    %v158 = vlaneseq
    %v159 = vand.u32 %v158, 127
    %160 = vmax.xlane.f32.xlu0 %v156
    %v161 = vpop.xlane.xlu0 %160
    %162 = vmax.xlane.f32.xlu0 %v157
    %v163 = vpop.xlane.xlu0 %162
    %vm164 = vcmp.eq.f32.partialorder %v156, %v161
    %vm165 = vcmp.eq.f32.partialorder %v157, %v163
    %v166 = vsel %vm164, %v159, 128
    %v167 = vsel %vm165, %v159, 128
    %v168 = vand.u32 %v166, 65535
    %v169 = vshra.s32 %v166, 16
    %v170 = vcvt.s32.f32 %v168
    %v171 = vcvt.s32.f32 %v169
    %172 = vmin.xlane.f32.xlu0 %v171
    %v173 = vpop.xlane.xlu0 %172
    %vm174 = vcmp.eq.f32.partialorder %v171, %v173
    %v175 = vsel %vm174, %v170, inf
    %176 = vmin.xlane.f32.xlu0 %v175
    %v177 = vpop.xlane.xlu0 %176
    %v178 = vcvt.f32.s32 %v177
    %v179 = vcvt.f32.s32 %v173
    %v180 = vshll.u32 %v179, 16
    %v181 = vadd.s32 %v180, %v178
    %v182 = vand.u32 %v167, 65535
    %v183 = vshra.s32 %v167, 16
    %v184 = vcvt.s32.f32 %v182
    %v185 = vcvt.s32.f32 %v183
    %186 = vmin.xlane.f32.xlu0 %v185
    %v187 = vpop.xlane.xlu0 %186
    %vm188 = vcmp.eq.f32.partialorder %v185, %v187
    %v189 = vsel %vm188, %v184, inf
    %190 = vmin.xlane.f32.xlu0 %v189
    %v191 = vpop.xlane.xlu0 %190
    %v192 = vcvt.f32.s32 %v191
    %v193 = vcvt.f32.s32 %v187
    %v194 = vshll.u32 %v193, 16
    %v195 = vadd.s32 %v194, %v192
    %vm196 = vcmp.eq.s32.totalorder %v159, %v181
    %vm197 = vcmp.eq.s32.totalorder %v159, %v195
    %v198 = vsel %vm196, -inf, %v156
    %v199 = vsel %vm197, -inf, %v157
    %200 = vmax.xlane.f32.xlu0 %v198
    %v201 = vpop.xlane.xlu0 %200
    %202 = vmax.xlane.f32.xlu0 %v199
    %v203 = vpop.xlane.xlu0 %202
    %vm204 = vcmp.eq.f32.partialorder %v198, %v201
    %vm205 = vcmp.eq.f32.partialorder %v199, %v203
    %v206 = vsel %vm204, %v159, 128
    %v207 = vsel %vm205, %v159, 128
    %v208 = vand.u32 %v206, 65535
    %v209 = vshra.s32 %v206, 16
    %v210 = vcvt.s32.f32 %v208
    %v211 = vcvt.s32.f32 %v209
    %212 = vmin.xlane.f32.xlu0 %v211
    %v213 = vpop.xlane.xlu0 %212
    %vm214 = vcmp.eq.f32.partialorder %v211, %v213
    %v215 = vsel %vm214, %v210, inf
    %216 = vmin.xlane.f32.xlu0 %v215
    %v217 = vpop.xlane.xlu0 %216
    %v218 = vcvt.f32.s32 %v217
    %v219 = vcvt.f32.s32 %v213
    %v220 = vshll.u32 %v219, 16
    %v221 = vadd.s32 %v220, %v218
    %v222 = vand.u32 %v207, 65535
    %v223 = vshra.s32 %v207, 16
    %v224 = vcvt.s32.f32 %v222
    %v225 = vcvt.s32.f32 %v223
    %226 = vmin.xlane.f32.xlu0 %v225
    %v227 = vpop.xlane.xlu0 %226
    %vm228 = vcmp.eq.f32.partialorder %v225, %v227
    %v229 = vsel %vm228, %v224, inf
    %230 = vmin.xlane.f32.xlu0 %v229
    %v231 = vpop.xlane.xlu0 %230
    %v232 = vcvt.f32.s32 %v231
    %v233 = vcvt.f32.s32 %v227
    %v234 = vshll.u32 %v233, 16
    %v235 = vadd.s32 %v234, %v232
    %vm236 = vcmp.eq.s32.totalorder %v159, %v221
    %vm237 = vcmp.eq.s32.totalorder %v159, %v235
    %v238 = vsel %vm236, -inf, %v198
    %v239 = vsel %vm237, -inf, %v199
    %240 = vmax.xlane.f32.xlu0 %v238
    %v241 = vpop.xlane.xlu0 %240
    %242 = vmax.xlane.f32.xlu0 %v239
    %v243 = vpop.xlane.xlu0 %242
    %vm244 = vcmp.eq.f32.partialorder %v238, %v241
    %vm245 = vcmp.eq.f32.partialorder %v239, %v243
    %v246 = vsel %vm244, %v159, 128
    %v247 = vsel %vm245, %v159, 128
    %v248 = vand.u32 %v246, 65535
    %v249 = vshra.s32 %v246, 16
    %v250 = vcvt.s32.f32 %v248
    %v251 = vcvt.s32.f32 %v249
    %252 = vmin.xlane.f32.xlu0 %v251
    %v253 = vpop.xlane.xlu0 %252
    %vm254 = vcmp.eq.f32.partialorder %v251, %v253
    %v255 = vsel %vm254, %v250, inf
    %256 = vmin.xlane.f32.xlu0 %v255
    %v257 = vpop.xlane.xlu0 %256
    %v258 = vcvt.f32.s32 %v257
    %v259 = vcvt.f32.s32 %v253
    %v260 = vshll.u32 %v259, 16
    %v261 = vadd.s32 %v260, %v258
    %v262 = vand.u32 %v247, 65535
    %v263 = vshra.s32 %v247, 16
    %v264 = vcvt.s32.f32 %v262
    %v265 = vcvt.s32.f32 %v263
    %266 = vmin.xlane.f32.xlu0 %v265
    %v267 = vpop.xlane.xlu0 %266
    %vm268 = vcmp.eq.f32.partialorder %v265, %v267
    %v269 = vsel %vm268, %v264, inf
    %270 = vmin.xlane.f32.xlu0 %v269
    %v271 = vpop.xlane.xlu0 %270
    %v272 = vcvt.f32.s32 %v271
    %v273 = vcvt.f32.s32 %v267
    %v274 = vshll.u32 %v273, 16
    %v275 = vadd.s32 %v274, %v272
    %vm276 = vcmp.eq.s32.totalorder %v159, %v261
    %vm277 = vcmp.eq.s32.totalorder %v159, %v275
    %v278 = vsel %vm276, -inf, %v238
    %v279 = vsel %vm277, -inf, %v239
    %280 = vmax.xlane.f32.xlu0 %v278
    %v281 = vpop.xlane.xlu0 %280
    %282 = vmax.xlane.f32.xlu0 %v279
    %v283 = vpop.xlane.xlu0 %282
    %vm284 = vcmp.eq.f32.partialorder %v278, %v281
    %vm285 = vcmp.eq.f32.partialorder %v279, %v283
    %v286 = vsel %vm284, %v159, 128
    %v287 = vsel %vm285, %v159, 128
    %v288 = vand.u32 %v286, 65535
    %v289 = vshra.s32 %v286, 16
    %v290 = vcvt.s32.f32 %v288
    %v291 = vcvt.s32.f32 %v289
    %292 = vmin.xlane.f32.xlu0 %v291
    %v293 = vpop.xlane.xlu0 %292
    %vm294 = vcmp.eq.f32.partialorder %v291, %v293
    %v295 = vsel %vm294, %v290, inf
    %296 = vmin.xlane.f32.xlu0 %v295
    %v297 = vpop.xlane.xlu0 %296
    %v298 = vcvt.f32.s32 %v297
    %v299 = vcvt.f32.s32 %v293
    %v300 = vshll.u32 %v299, 16
    %v301 = vadd.s32 %v300, %v298
    %v302 = vand.u32 %v287, 65535
    %v303 = vshra.s32 %v287, 16
    %v304 = vcvt.s32.f32 %v302
    %v305 = vcvt.s32.f32 %v303
    %306 = vmin.xlane.f32.xlu0 %v305
    %v307 = vpop.xlane.xlu0 %306
    %vm308 = vcmp.eq.f32.partialorder %v305, %v307
    %v309 = vsel %vm308, %v304, inf
    %310 = vmin.xlane.f32.xlu0 %v309
    %v311 = vpop.xlane.xlu0 %310
    %v312 = vcvt.f32.s32 %v311
    %v313 = vcvt.f32.s32 %v307
    %v314 = vshll.u32 %v313, 16
    %v315 = vadd.s32 %v314, %v312
    %vm316 = vcmp.gt.f32.partialorder %v156, %v281
    %vm317 = vcmp.gt.f32.partialorder %v157, %v283
    %vm318 = vcmp.eq.f32.partialorder %v156, %v281
    %vm319 = vcmp.eq.f32.partialorder %v157, %v283
    %vm320 = vcmp.le.s32.totalorder %v159, %v301
    %vm321 = vcmp.le.s32.totalorder %v159, %v315
    %vm322 = vmand %vm318, %vm320
    %vm323 = vmand %vm319, %vm321
    %vm324 = vmor %vm316, %vm322
    %vm325 = vmor %vm317, %vm323
    %v326 = vsel %vm324, %v156, -inf
    %v327 = vsel %vm325, %v157, -inf
    %328 = vst [vmem:[#allocation8] sm:$0xff] %v326
    %329 = vst [vmem:[#allocation8 + $0x8] sm:$0xff] %v327
    // Predicated region
    $region26: #{tpu_custom_call.1} parent=1 // pred_check
      _
    $region27: #{tpu_custom_call.1} parent=1 // pred_check_branch
      %331 = sbr.rel (0) target = $region29
    $region28: #{tpu_custom_call.1} parent=1 // pred_region
      %s333 = ssub.s32 256, 256
      %334 = vsyncadd [#allocation4], %s333
      %s335 = sshll.u32 [#allocation8], 4
      %s336 = int_to_ptr.vmem [resolvable:$true] %s335
      %341 = dma.vmem_to_hbm [thread:$0]  %s336, 256, %s3, [#allocation4], 128, 128, 8
    $region29: #{tpu_custom_call.1} parent=1 // pred_fallthru
      _
    // Predicated region
    $region30: #{tpu_custom_call.1} parent=1 // pred_check
      _
    $region31: #{tpu_custom_call.1} parent=1 // pred_check_branch
      %343 = sbr.rel (0) target = $region33
    $region32: #{tpu_custom_call.1} parent=1 // pred_region
      %344 = dma.done [#allocation4], 256
    $region33: #{tpu_custom_call.1} parent=1 // pred_fallthru
      _
    %345 = vsyncpa [#allocation3], 1
    %346 = vsyncpa [#allocation6], 1
    %347 = vsyncpa [#allocation4], 1

</llo_original>
